<compile_context>
chip_gen: v6e
topology: v6e:2x2x1
jax: 0.10.0
libtpu: 0.0.40
codegen_flags: <defaults>
</compile_context>

<pallas_src>
import math

import jax
import jax.numpy as jnp
from jax import lax
from jax.experimental import pallas as pl
from jax.experimental.pallas import tpu as pltpu

_TILE_T = 8192  # rows per tile -> 8192*128*4B = 4 MiB f32 output block

_HAS_STATEFUL_NORMAL = hasattr(pltpu, "stateful_normal")


def _uniform_from_bits(bits_u32):
    """Mantissa trick: uint32 bits -> uniform f32 in [0, 1). No int->float convert."""
    f = lax.bitcast_convert_type((bits_u32 >> 9) | jnp.uint32(0x3F800000),
                                 jnp.float32)
    return f - jnp.float32(1.0)


def _box_muller(bits1_u32, bits2_u32):
    """Two uint32 bit tiles -> two standard-normal tiles (same shape).

    Uses cos for z1 and sign*sqrt(1-c^2) for z2 (sin-from-cos), so only one
    trig polynomial per element pair.
    """
    u1 = jnp.maximum(_uniform_from_bits(bits1_u32), jnp.float32(1e-12))  # log(0) guard
    u2 = _uniform_from_bits(bits2_u32)
    r = jnp.sqrt(jnp.float32(-2.0) * jnp.log(u1))
    c = jnp.cos(jnp.float32(2.0 * math.pi) * u2)
    z1 = r * c
    sign = jnp.where(u2 < jnp.float32(0.5), jnp.float32(1.0), jnp.float32(-1.0))
    z2 = r * sign * jnp.sqrt(jnp.maximum(jnp.float32(1.0) - c * c, jnp.float32(0.0)))
    return z1, z2


def _bm_store(bits_u32, out_ref):
    """Box-Muller a (rows, D) uint32 bits tile into out_ref (rows, D).

    Prefers a row-axis (sublane) split: z1 fills the top half rows, z2 the
    bottom half -> every op runs on full (8,128) vregs and the stores are
    plain unmasked 128-lane stores.  Falls back to a lane split only for
    tiny/odd row counts (static Python branch at trace time).
    """
    rows, d = bits_u32.shape
    if rows % 2 == 0 and rows >= 2:
        half = rows // 2
        z1, z2 = _box_muller(bits_u32[:half], bits_u32[half:])
        out_ref[:half, :] = z1.astype(out_ref.dtype)
        out_ref[half:, :] = z2.astype(out_ref.dtype)
    else:
        hd = d // 2
        z1, z2 = _box_muller(bits_u32[..., :hd], bits_u32[..., hd:])
        out_ref[...] = jnp.concatenate([z1, z2], axis=-1).astype(out_ref.dtype)


def _make_tpu_kernel(use_stateful):
    def kernel(seed_ref, out_ref):
        i = pl.program_id(0)
        # Distinct stream per (seed, flattened tile) so tiling never replays a
        # stream.  (Reproducibility caveat: results depend on the tiling.)
        pltpu.prng_seed(seed_ref[0], i)
        if use_stateful:
            out_ref[...] = pltpu.stateful_normal(out_ref.shape,
                                                 jnp.float32).astype(out_ref.dtype)
        else:
            bits = pltpu.bitcast(pltpu.prng_random_bits(out_ref.shape), jnp.uint32)
            _bm_store(bits, out_ref)
    return kernel


def _randn_bits_kernel(bits_ref, out_ref):
    """Portable path: transform externally generated uniform bits."""
    _bm_store(bits_ref[...], out_ref)


def _tpu_randn(seed, B, Tp, D, tile_t, use_stateful):
    nt = pl.cdiv(Tp, tile_t)
    seed_arr = jnp.asarray([seed], dtype=jnp.int32)
    return pl.pallas_call(
        _make_tpu_kernel(use_stateful),
        out_shape=jax.ShapeDtypeStruct((B, Tp, D), jnp.float32),
        grid_spec=pltpu.PrefetchScalarGridSpec(
            num_scalar_prefetch=1,            # seed lands in SMEM
            grid=(B * nt,),                   # flat axis -> even megacore sharding
            in_specs=[],
            out_specs=pl.BlockSpec((None, tile_t, D),
                                   lambda i, seed: (i // nt, i % nt, 0)),
        ),
        compiler_params=pltpu.CompilerParams(
            dimension_semantics=("parallel",),  # independent tiles
            has_side_effects=True,              # stateful PRNG
        ),
    )(seed_arr)


def my_encoder_forward(audio: jnp.ndarray, seed: int = 0,
                       output_dim: int = 128) -> jnp.ndarray:
    """JAX/Pallas equivalent of MyEncoder.forward.

    audio: [T] or [B, T] (values unused, matching the torch module).
    Returns: [B, T // 2, output_dim] float32 standard-normal samples.
    """
    if audio.ndim == 1:
        audio = audio[None, :]
    B, T = audio.shape
    Tp = int(T // 2)
    D = int(output_dim)
    assert D % 2 == 0, "output_dim must be even for the Box-Muller fallback"

    tile_t = min(Tp, _TILE_T)          # full rows if small, else 4 MiB tiles
    nt = pl.cdiv(Tp, tile_t)
    out_shape = jax.ShapeDtypeStruct((B, Tp, D), jnp.float32)

    if jax.default_backend() == "tpu":
        if _HAS_STATEFUL_NORMAL:
            try:
                out = _tpu_randn(seed, B, Tp, D, tile_t, use_stateful=True)
                return jax.block_until_ready(out)
            except Exception:
                # stateful_normal not lowerable in this pin -> Box-Muller path
                pass
        return _tpu_randn(seed, B, Tp, D, tile_t, use_stateful=False)

    # Fallback for backends where pltpu.prng_seed has no lowering
    # (e.g. CPU / interpret): generate bits outside, transform in-kernel.
    key = jax.random.PRNGKey(seed)
    bits = jax.random.bits(key, (B, Tp, D), dtype=jnp.uint32)
    return pl.pallas_call(
        _randn_bits_kernel,
        out_shape=out_shape,
        grid=(B, nt),
        in_specs=[pl.BlockSpec((None, tile_t, D), lambda b, t: (b, t, 0))],
        out_specs=pl.BlockSpec((None, tile_t, D), lambda b, t: (b, t, 0)),
    )(bits)


if __name__ == "__main__":
    key = jax.random.PRNGKey(0)
    B, T = 2, 16                      # small shapes; T' = 8, D = 128
    audio = jax.random.normal(key, (B, T), dtype=jnp.float32)

    encoded = my_encoder_forward(audio, seed=0)
    encoded = jax.block_until_ready(encoded)

    assert encoded.shape == (B, T // 2, 128), encoded.shape
    assert encoded.dtype == jnp.float32
    # sanity: samples should look roughly standard-normal, not constant
    assert bool(jnp.isfinite(encoded).all())
    assert float(jnp.std(encoded)) > 0.5

    # TODO(synk): torch.randn advances global RNG state between calls; here the
    # caller must advance `seed` explicitly to get fresh samples per call.
    print("KERNEL_OK")
</pallas_src>

<mosaic_0001>
module attributes {stable_mosaic.version = 11 : i64} {
  func.func @_randn_bits_kernel(%arg0: i32, %arg1: i32, %arg2: memref<1x8x128xi32, #tpu.memory_space<vmem>>, %arg3: memref<1x8x128xf32, #tpu.memory_space<vmem>>) attributes {dimension_semantics = [#tpu.dimension_semantics<arbitrary>, #tpu.dimension_semantics<arbitrary>], iteration_bounds = array<i64: 2, 1>, scalar_prefetch = 0 : i64, scratch_operands = 0 : i64, tpu.core_type = #tpu.core_type<tc>, window_params = [{transform_indices = @transform_0, window_bounds = array<i64: 1, 8, 128>}, {transform_indices = @transform_1, window_bounds = array<i64: 1, 8, 128>}]} {
    %c0 = arith.constant 0 : index
    %c0_0 = arith.constant 0 : index
    %c0_1 = arith.constant 0 : index
    %0 = vector.load %arg2[%c0, %c0_0, %c0_1] : memref<1x8x128xi32, #tpu.memory_space<vmem>>, vector<1x8x128xi32>
    %1 = vector.shape_cast %0 : vector<1x8x128xi32> to vector<8x128xi32>
    %2 = vector.extract_strided_slice %1 {offsets = [0, 0], sizes = [4, 128], strides = [1, 1]} : vector<8x128xi32> to vector<4x128xi32>
    %3 = vector.extract_strided_slice %1 {offsets = [4, 0], sizes = [4, 128], strides = [1, 1]} : vector<8x128xi32> to vector<4x128xi32>
    %c9_i32 = arith.constant 9 : i32
    %4 = vector.broadcast %c9_i32 : i32 to vector<4x128xi32>
    %5 = arith.shrui %2, %4 : vector<4x128xi32>
    %c1065353216_i32 = arith.constant 1065353216 : i32
    %6 = vector.broadcast %c1065353216_i32 : i32 to vector<4x128xi32>
    %7 = arith.ori %5, %6 : vector<4x128xi32>
    %8 = tpu.bitcast %7 : vector<4x128xi32> -> vector<4x128xf32>
    %cst = arith.constant 1.000000e+00 : f32
    %9 = vector.broadcast %cst : f32 to vector<4x128xf32>
    %10 = arith.subf %8, %9 : vector<4x128xf32>
    %cst_2 = arith.constant 9.99999996E-13 : f32
    %11 = vector.broadcast %cst_2 : f32 to vector<4x128xf32>
    %12 = arith.maximumf %10, %11 : vector<4x128xf32>
    %c9_i32_3 = arith.constant 9 : i32
    %13 = vector.broadcast %c9_i32_3 : i32 to vector<4x128xi32>
    %14 = arith.shrui %3, %13 : vector<4x128xi32>
    %c1065353216_i32_4 = arith.constant 1065353216 : i32
    %15 = vector.broadcast %c1065353216_i32_4 : i32 to vector<4x128xi32>
    %16 = arith.ori %14, %15 : vector<4x128xi32>
    %17 = tpu.bitcast %16 : vector<4x128xi32> -> vector<4x128xf32>
    %cst_5 = arith.constant 1.000000e+00 : f32
    %18 = vector.broadcast %cst_5 : f32 to vector<4x128xf32>
    %19 = arith.subf %17, %18 : vector<4x128xf32>
    %20 = math.log %12 : vector<4x128xf32>
    %cst_6 = arith.constant -2.000000e+00 : f32
    %21 = vector.broadcast %cst_6 : f32 to vector<4x128xf32>
    %22 = arith.mulf %21, %20 : vector<4x128xf32>
    %23 = math.sqrt %22 : vector<4x128xf32>
    %cst_7 = arith.constant 6.28318548 : f32
    %24 = vector.broadcast %cst_7 : f32 to vector<4x128xf32>
    %25 = arith.mulf %24, %19 : vector<4x128xf32>
    %26 = math.cos %25 : vector<4x128xf32>
    %27 = arith.mulf %23, %26 : vector<4x128xf32>
    %cst_8 = arith.constant 5.000000e-01 : f32
    %28 = vector.broadcast %cst_8 : f32 to vector<4x128xf32>
    %29 = arith.cmpf olt, %19, %28 : vector<4x128xf32>
    %cst_9 = arith.constant 1.000000e+00 : f32
    %cst_10 = arith.constant -1.000000e+00 : f32
    %30 = vector.broadcast %cst_9 : f32 to vector<4x128xf32>
    %31 = vector.broadcast %cst_10 : f32 to vector<4x128xf32>
    %32 = arith.select %29, %30, %31 : vector<4x128xi1>, vector<4x128xf32>
    %33 = arith.mulf %23, %32 : vector<4x128xf32>
    %34 = arith.mulf %26, %26 : vector<4x128xf32>
    %cst_11 = arith.constant 1.000000e+00 : f32
    %35 = vector.broadcast %cst_11 : f32 to vector<4x128xf32>
    %36 = arith.subf %35, %34 : vector<4x128xf32>
    %cst_12 = arith.constant 0.000000e+00 : f32
    %37 = vector.broadcast %cst_12 : f32 to vector<4x128xf32>
    %38 = arith.maximumf %36, %37 : vector<4x128xf32>
    %39 = math.sqrt %38 : vector<4x128xf32>
    %40 = arith.mulf %33, %39 : vector<4x128xf32>
    %c0_13 = arith.constant 0 : index
    %c0_14 = arith.constant 0 : index
    %c0_15 = arith.constant 0 : index
    %41 = vector.load %arg3[%c0_13, %c0_14, %c0_15] : memref<1x8x128xf32, #tpu.memory_space<vmem>>, vector<1x4x128xf32>
    %42 = vector.shape_cast %41 : vector<1x4x128xf32> to vector<4x128xf32>
    %43 = vector.shape_cast %27 : vector<4x128xf32> to vector<1x4x128xf32>
    tpu.vector_store %arg3[%c0_13, %c0_14, %c0_15], %43 {strides = array<i32>} : memref<1x8x128xf32, #tpu.memory_space<vmem>>, vector<1x4x128xf32>,
    %c0_16 = arith.constant 0 : index
    %c4 = arith.constant 4 : index
    %c0_17 = arith.constant 0 : index
    %44 = vector.load %arg3[%c0_16, %c4, %c0_17] : memref<1x8x128xf32, #tpu.memory_space<vmem>>, vector<1x4x128xf32>
    %45 = vector.shape_cast %44 : vector<1x4x128xf32> to vector<4x128xf32>
    %46 = vector.shape_cast %40 : vector<4x128xf32> to vector<1x4x128xf32>
    tpu.vector_store %arg3[%c0_16, %c4, %c0_17], %46 {strides = array<i32>} : memref<1x8x128xf32, #tpu.memory_space<vmem>>, vector<1x4x128xf32>,
    return
  }
  func.func @transform_0(%arg0: i32, %arg1: i32) -> (i32, i32, i32) {
    %c0_i32 = arith.constant 0 : i32
    %c0_i32_0 = arith.constant 0 : i32
    return %arg0, %arg1, %c0_i32 : i32, i32, i32
  }
  func.func @transform_1(%arg0: i32, %arg1: i32) -> (i32, i32, i32) {
    %c0_i32 = arith.constant 0 : i32
    %c0_i32_0 = arith.constant 0 : i32
    return %arg0, %arg1, %c0_i32 : i32, i32, i32
  }
}

</mosaic_0001>

<llo_original>
// kernel: tpu_custom_call.1
$region0: #{tpu_custom_call.1}
  #allocation0 [shape = 'u32[]', space=smem, size = 0x4, offset = 0x4, fixed_abs, tag = 'smem constant byte address 0x4 - core index']
  #allocation1 [shape = 'u32[144,128]{1,0:T(1,128)}', space=vmem, size = 0x12000, scoped, tag = 'internal scratch']
  %s0 = inlined_call_operand.hbm [shape: u32[2,8,128], index: 0, kind: input, shape index: {}]
  %s1 = inlined_call_operand.hbm [shape: f32[2,8,128], index: 1, kind: output, shape index: {}]
  %s2 = sld [smem:[#allocation0]]
  $region41: #{tpu_custom_call.1} parent=0
    _
  %s4 = ssub.s32 1, %s2
  %s5 = scalar_select 0, %s4, %s2
  $region1: #{tpu_custom_call.1} parent=0
    #allocation2 [shape = 'u8[8192]{0}', space=vmem, size = 0x2000, scoped, tag = 'input window, operand 0']
    #allocation3 [shape = 's32[2]{0}', space=sflag, size = 0x8, scoped, tag = 'scoped memory for tpu_custom_call.1']
    #allocation4 [shape = 's32[2]{0}', space=sflag, size = 0x8, scoped, tag = 'scoped memory for tpu_custom_call.1']
    #allocation5 [shape = 'u8[8192]{0}', space=vmem, size = 0x2000, scoped, tag = 'output window, operand 0']
    %6 = vsyncpa [#allocation3], 0
    %s7 = scalar_lea.sflag [#allocation3], 1
    %8 = vsyncpa %s7, 0
    %9 = vsyncpa [#allocation4], 0
    %s10 = scalar_lea.sflag [#allocation4], 1
    %11 = vsyncpa %s10, 0
    loop: start=0, step=1, limit=4
    $region2: #{tpu_custom_call.1} parent=1 // loop_pre_header
      _
    $region3: #{tpu_custom_call.1} parent=1 // loop_header
      %s13 = sphi 0, %s17
      %p14 = scmp.ge.s32.totalorder %s13, 4
      %s20 = sphi 0, %s32
      %s21 = sphi 0, %s28
      %s22 = sphi 0, %s20
      %s23 = sphi 0, %s21
      %s24 = sphi 0, %s22
      %s25 = sphi 0, %s23
      %s37 = sphi 0, %s39
      %s40 = sphi 0, %s37
      %s41 = sphi 0, %s40
      %s57 = sphi 0, %s41
      %s65 = sphi 0, %s67
      %s68 = sphi 0, %s65
      %s69 = sphi 0, %s68
      %s85 = sphi 0, %s69
    $region4: #{tpu_custom_call.1} parent=1 // loop_header_branch
      %16 = sbr.rel (%p14) target = $region8
    $region5: #{tpu_custom_call.1} parent=1 // loop_body
      %s18 = ssub.s32 %s13, 1
      %s19 = ssub.s32 %s13, 2
      %s26 = sadd.s32 1, %s21
      %p27 = scmp.ge.s32.totalorder %s26, 1
      %s28 = scalar_select %p27, 0, %s26
      %s29 = sadd.s32 1, %s20
      %s30 = scalar_select %p27, %s29, %s20
      %p31 = scmp.ge.s32.totalorder %s30, 2
      %s32 = scalar_select %p31, 0, %s30
      %s33 = ssub.s32 %s20, %s32
      %s34 = ssub.s32 %s21, %s28
      %s35 = sor.u32 %s33, %s34
      %p36 = scmp.eq.s32.totalorder %s35, 0
      %s38 = sadd.s32 %s37, 1
      %s39 = scalar_select %p36, %s37, %s38
      %p42 = pneg %p36
      %p43 = scmp.eq.s32.totalorder %s13, 1
      %p44 = por %p42, %p43
      %p45 = scmp.ne.s32.totalorder %s37, %s40
      %p46 = scmp.eq.s32.totalorder %s13, 0
      %p47 = por %p45, %p46
      %p48 = scmp.ne.s32.totalorder %s37, %s40
      %p49 = scmp.eq.s32.totalorder %s18, 1
      %p50 = por %p48, %p49
      %p51 = scmp.ne.s32.totalorder %s40, %s41
      %p52 = scmp.eq.s32.totalorder %s18, 0
      %p53 = por %p51, %p52
      %p54 = scmp.ne.s32.totalorder %s40, %s41
      %p55 = scmp.eq.s32.totalorder %s19, 1
      %p56 = por %p54, %p55
      %p58 = scmp.ne.s32.totalorder %s41, %s57
      %p59 = scmp.eq.s32.totalorder %s19, 0
      %p60 = por %p58, %p59
      %s61 = ssub.s32 %s20, %s32
      %s62 = ssub.s32 %s21, %s28
      %s63 = sor.u32 %s61, %s62
      %p64 = scmp.eq.s32.totalorder %s63, 0
      %s66 = sadd.s32 %s65, 1
      %s67 = scalar_select %p64, %s65, %s66
      %p70 = pneg %p64
      %p71 = scmp.eq.s32.totalorder %s13, 1
      %p72 = por %p70, %p71
      %p73 = scmp.ne.s32.totalorder %s65, %s68
      %p74 = scmp.eq.s32.totalorder %s13, 0
      %p75 = por %p73, %p74
      %p76 = scmp.ne.s32.totalorder %s65, %s68
      %p77 = scmp.eq.s32.totalorder %s18, 1
      %p78 = por %p76, %p77
      %p79 = scmp.ne.s32.totalorder %s68, %s69
      %p80 = scmp.eq.s32.totalorder %s18, 0
      %p81 = por %p79, %p80
      %p82 = scmp.ne.s32.totalorder %s68, %s69
      %p83 = scmp.eq.s32.totalorder %s19, 1
      %p84 = por %p82, %p83
      %p86 = scmp.ne.s32.totalorder %s69, %s85
      %p87 = scmp.eq.s32.totalorder %s19, 0
      %p88 = por %p86, %p87
      %p89 = scmp.le.s32.totalorder 1, %s13
      %p90 = scmp.lt.s32.totalorder %s13, 3
      %p91 = pnand %p89, %p90
      %p92 = pneg %p91
      // Predicated region
      $region9: #{tpu_custom_call.1} parent=5 // pred_check
        _
      $region10: #{tpu_custom_call.1} parent=5 // pred_check_branch
        %94 = sbr.rel (%p91) target = $region12
      $region11: #{tpu_custom_call.1} parent=5 // pred_region
        %s95 = ssub.s32 %s13, 1
      $region12: #{tpu_custom_call.1} parent=5 // pred_fallthru
        _
      %p96 = scmp.lt.s32.totalorder %s13, 2
      // Predicated region
      $region13: #{tpu_custom_call.1} parent=5 // pred_check
        %p97 = pneg %p96
      $region14: #{tpu_custom_call.1} parent=5 // pred_check_branch
        %99 = sbr.rel (%p97) target = $region16
      $region15: #{tpu_custom_call.1} parent=5 // pred_region
        // Predicated region
        $region17: #{tpu_custom_call.1} parent=15 // pred_check
          %p100 = pneg %p47
        $region18: #{tpu_custom_call.1} parent=15 // pred_check_branch
          %102 = sbr.rel (%p100) target = $region20
        $region19: #{tpu_custom_call.1} parent=15 // pred_region
          %s103 = sand.u32 %s37, 1
          %s104 = scalar_lea.sflag [#allocation3], %s103
          %s105 = sand.u32 %s37, 1
          %s106 = smul.addr %s105, 8
          %s107 = scalar_lea.vmem [#allocation2], %s106
          %s109 = ssub.s32 128, 128
          %110 = vsyncadd %s104, %s109
          %s111 = sadd.s32 %s21, %s20
          %s112 = smul.addr %s111, 128
          %s113 = scalar_lea.hbm %s0, %s112
          %s115 = sshll.u32 %s107, 4
          %s116 = int_to_ptr.vmem [resolvable:$true] %s115
          %118 = dma.hbm_to_vmem [thread:$0]  %s113, 128, %s116, %s104
        $region20: #{tpu_custom_call.1} parent=15 // pred_fallthru
          _
      $region16: #{tpu_custom_call.1} parent=5 // pred_fallthru
        _
      %p119 = scmp.le.s32.totalorder 1, %s13
      %p120 = scmp.lt.s32.totalorder %s13, 3
      %p121 = pnand %p119, %p120
      %p122 = pneg %p121
      // Predicated region
      $region21: #{tpu_custom_call.1} parent=5 // pred_check
        _
      $region22: #{tpu_custom_call.1} parent=5 // pred_check_branch
        %124 = sbr.rel (%p121) target = $region24
      $region23: #{tpu_custom_call.1} parent=5 // pred_region
        %s125 = ssub.s32 %s13, 1
        %s126 = sand.u32 %s40, 1
        %s127 = scalar_lea.sflag [#allocation3], %s126
        %s128 = sand.u32 %s40, 1
        %s129 = smul.addr %s128, 8
        %s130 = scalar_lea.vmem [#allocation2], %s129
        // Predicated region
        $region25: #{tpu_custom_call.1} parent=23 // pred_check
          %p131 = pneg %p53
        $region26: #{tpu_custom_call.1} parent=23 // pred_check_branch
          %133 = sbr.rel (%p131) target = $region28
        $region27: #{tpu_custom_call.1} parent=23 // pred_region
          %134 = dma.done %s127, 128
        $region28: #{tpu_custom_call.1} parent=23 // pred_fallthru
          _
        %s135 = sand.u32 %s40, 1
        %s136 = scalar_lea.sflag [#allocation3], %s135
        %s137 = sand.u32 %s40, 1
        %s138 = smul.addr %s137, 8
        %s139 = scalar_lea.vmem [#allocation2], %s138
        %p140 = pneg %p53
        %p141 = pneg %p50
        %p142 = pneg %p81
        %p143 = pneg %p78
        %s144 = sand.u32 %s68, 1
        %s145 = scalar_lea.sflag [#allocation4], %s144
        %s146 = sand.u32 %s68, 1
        %s147 = smul.addr %s146, 8
        %s148 = scalar_lea.vmem [#allocation5], %s147
        %v149 = vld [vmem:[%s130] sm:$0xff]
        %v150 = vshrl.u32 %v149, 9
        %v151 = vor.u32 %v150, 1065353216
        %v153 = vsub.f32 %v151, 1.0
        %v154 = vmax.f32 %v153, 1e-12
        %v155 = vlog2.pop %v154
        %v156 = vmul.f32 %v155, 0.6931472
        %v157 = vmul.f32 %v156, -2.0
        %v158 = vrsqrt.pop %v157
        %v159 = vmul.f32 %v157, %v158
        %vm160 = vcmp.eq.f32.partialorder %v157, inf
        %v161 = vsel %vm160, %v157, %v159
        %vm162 = vcmp.eq.f32.partialorder %v157, 0.0
        %v163 = vand.u32 %v157, 2147483648
        %v164 = vsel %vm162, %v163, %v161
        %v165 = vmul.f32 %v153, 6.2831855
        %v166 = vand.u32 2147483647, %v165
        %vm167 = vcmp.le.f32.partialorder %v166, 0.7853982
        %vm168 = vcmp.lt.s32.totalorder %v165, 0
        %v169 = vand.u32 %v165, 2139095040
        %v170 = vshrl.u32 %v169, 23
        %v171 = vsub.s32 %v170, 127
        %v172 = vand.u32 2147483647, %v165
        %v173 = vand.u32 %v172, 8388607
        %v174 = vor.u32 %v173, 8388608
        %v175 = vsub.s32 0, %v174
        %v176 = vadd.s32 %v171, 1
        %vm177 = vcmp.gt.s32.totalorder %v176, 0
        %v178 = vsel %vm177, %v176, 0
        %v179 = vshrl.u32 %v178, 5
        %v180 = vand.u32 %v178, 31
        %v181 = vsub.s32 32, %v180
        %v182 = vshrl.u32 683565275, %v181
        %v183 = vshll.u32 683565275, %v180
        %v184 = vshrl.u32 2475754826, %v181
        %v185 = vor.u32 %v183, %v184
        %v186 = vshll.u32 2475754826, %v180
        %v187 = vshrl.u32 2131351028, %v181
        %v188 = vor.u32 %v186, %v187
        %v189 = vshll.u32 2131351028, %v180
        %v190 = vshrl.u32 2102212464, %v181
        %v191 = vor.u32 %v189, %v190
        %v192 = vshll.u32 2102212464, %v180
        %v193 = vshrl.u32 920167782, %v181
        %v194 = vor.u32 %v192, %v193
        %v195 = vshll.u32 920167782, %v180
        %v196 = vshrl.u32 1326507024, %v181
        %v197 = vor.u32 %v195, %v196
        %vm198 = vcmp.lt.s32.totalorder %v179, 1
        %vm199 = vcmp.lt.s32.totalorder %v179, 2
        %vm200 = vcmp.lt.s32.totalorder %v179, 3
        %vm201 = vcmp.lt.s32.totalorder %v179, 4
        %v202 = vsel %vm198, %v182, %v185
        %v203 = vsel %vm201, %v191, 2102212464
        %v204 = vsel %vm200, %v188, %v203
        %v205 = vsel %vm199, %v202, %v204
        %v206 = vsel %vm198, %v185, %v188
        %v207 = vsel %vm201, %v194, 920167782
        %v208 = vsel %vm200, %v191, %v207
        %v209 = vsel %vm199, %v206, %v208
        %v210 = vsel %vm198, %v188, %v191
        %v211 = vsel %vm201, %v197, 1326507024
        %v212 = vsel %vm200, %v194, %v211
        %v213 = vsel %vm199, %v210, %v212
        %v214 = vshll.u32 %v174, 8
        %v215 = vmul.u32.u64.compose %v214, %v213
        %v216 = vextract.low.u32 %v215
        %v217 = vextract.high.u32 %v215
        %v218 = vmul.u32.u64.compose %v214, %v209
        %v219 = vextract.low.u32 %v218
        %v220 = vextract.high.u32 %v218
        %v221 = vmul.u32 %v214, %v205
        %v222 = vadd.s32 %v217, %v219
        %vm223 = vc.u32 %v217, %v219
        %v224 = vadd.s32 %v220, 1
        %v225 = vsel %vm223, %v224, %v220
        %v226 = vadd.s32 %v221, %v225
        %v227 = vadd.s32 %v226, 536870912
        %v228 = vshrl.u32 %v227, 30
        %v229 = vshll.u32 %v228, 30
        %v230 = vsub.s32 %v226, %v229
        %vm231 = vcmp.lt.s32.totalorder %v230, 0
        %v232 = vsub.s32 0, %v230
        %v233 = vsel %vm231, %v232, %v230
        %v234 = vclz %v233
        %v235 = vsub.s32 %v234, 2
        %vm236 = vcmp.gt.s32.totalorder 0, %v235
        %v237 = vsel %vm236, 0, %v235
        %v238 = vsub.s32 32, %v237
        %v239 = vshll.u32 %v230, %v237
        %v240 = vshrl.u32 %v222, %v238
        %v241 = vor.u32 %v239, %v240
        %v242 = vsub.s32 4294967266, %v237
        %v243 = vadd.s32 %v242, 127
        %v244 = vshll.u32 %v243, 23
        %v245 = vor.u32 4788187, %v244
        %v246 = vand.u32 2147483647, %v245
        %v248 = vcvt.s32.f32 %v241
        %v249 = vmul.f32 %v248, %v246
        %v250 = vxor.u32 %v249, 2147483648
        %v251 = vsel %vm168, %v250, %v249
        %v252 = vsub.s32 4, %v228
        %v253 = vsel %vm168, %v252, %v228
        %v254 = vsel %vm167, %v165, %v251
        %v255 = vsel %vm167, 0, %v253
        %v256 = vcosq.f32.pop %v254
        %v257 = vsinq.f32.pop %v254
        %vm258 = vweird.f32 %v165
        %v259 = vand.u32 %v255, 3
        %vm260 = vcmp.lt.s32.totalorder %v259, 2
        %vm261 = vcmp.eq.s32.totalorder %v259, 0
        %v262 = vxor.u32 %v257, 2147483648
        %v263 = vsel %vm261, %v256, %v262
        %vm264 = vcmp.eq.s32.totalorder %v259, 2
        %v265 = vxor.u32 %v256, 2147483648
        %v266 = vsel %vm264, %v265, %v257
        %v267 = vsel %vm260, %v263, %v266
        %v268 = vsel %vm258, nan, %v267
        %v270 = vrot.slane %v268, 4
        %v272 = vmul.f32 %v164, %v270
        %vm273 = vcmp.lt.f32.partialorder %v153, 0.5
        %v274 = vsel %vm273, 1.0, -1.0
        %v276 = vrot.slane %v274, 4
        %v278 = vmul.f32 %v164, %v276
        %v279 = vmul.f32 %v268, %v268
        %v280 = vsub.f32 1.0, %v279
        %v281 = vmax.f32 %v280, 0.0
        %v282 = vrsqrt.pop %v281
        %v283 = vmul.f32 %v281, %v282
        %vm284 = vcmp.eq.f32.partialorder %v281, inf
        %v285 = vsel %vm284, %v281, %v283
        %vm286 = vcmp.eq.f32.partialorder %v281, 0.0
        %v287 = vand.u32 %v281, 2147483648
        %v288 = vsel %vm286, %v287, %v285
        %v290 = vrot.slane %v288, 4
        %v292 = vmul.f32 %v278, %v290
        %293 = vst [vmem:[%s148] sm:$0xf] %v272
        %294 = vst [vmem:[%s148 + $0x4] sm:$0xf] %v292
        %s295 = sand.u32 %s68, 1
        %s296 = scalar_lea.sflag [#allocation4], %s295
        %s297 = sand.u32 %s68, 1
        %s298 = smul.addr %s297, 8
        %s299 = scalar_lea.vmem [#allocation5], %s298
        // Predicated region
        $region29: #{tpu_custom_call.1} parent=23 // pred_check
          %p300 = pneg %p78
        $region30: #{tpu_custom_call.1} parent=23 // pred_check_branch
          %302 = sbr.rel (%p300) target = $region32
        $region31: #{tpu_custom_call.1} parent=23 // pred_region
          %s304 = ssub.s32 128, 128
          %305 = vsyncadd %s296, %s304
          %s306 = sadd.s32 %s23, %s22
          %s307 = smul.addr %s306, 128
          %s308 = scalar_lea.hbm %s1, %s307
          %s310 = sshll.u32 %s299, 4
          %s311 = int_to_ptr.vmem [resolvable:$true] %s310
          %313 = dma.vmem_to_hbm [thread:$0]  %s311, 128, %s308, %s296
        $region32: #{tpu_custom_call.1} parent=23 // pred_fallthru
          _
      $region24: #{tpu_custom_call.1} parent=5 // pred_fallthru
        _
      %p314 = scmp.le.s32.totalorder 2, %s13
      // Predicated region
      $region33: #{tpu_custom_call.1} parent=5 // pred_check
        %p315 = pneg %p314
      $region34: #{tpu_custom_call.1} parent=5 // pred_check_branch
        %317 = sbr.rel (%p315) target = $region36
      $region35: #{tpu_custom_call.1} parent=5 // pred_region
        %s318 = ssub.s32 %s13, 2
        // Predicated region
        $region37: #{tpu_custom_call.1} parent=35 // pred_check
          %p319 = pneg %p84
        $region38: #{tpu_custom_call.1} parent=35 // pred_check_branch
          %321 = sbr.rel (%p319) target = $region40
        $region39: #{tpu_custom_call.1} parent=35 // pred_region
          %s322 = sand.u32 %s69, 1
          %s323 = scalar_lea.sflag [#allocation4], %s322
          %s324 = sand.u32 %s69, 1
          %s325 = smul.addr %s324, 8
          %s326 = scalar_lea.vmem [#allocation5], %s325
          %327 = dma.done %s323, 128
        $region40: #{tpu_custom_call.1} parent=35 // pred_fallthru
          _
      $region36: #{tpu_custom_call.1} parent=5 // pred_fallthru
        _
    $region6: #{tpu_custom_call.1} parent=1 // loop_footer
      %s17 = sadd.s32 1, %s13
    $region7: #{tpu_custom_call.1} parent=1 // loop_footer_branch
      %12 = sbr.rel target = $region3
    $region8: #{tpu_custom_call.1} parent=1 // loop_exit
      _
    %328 = vsyncpa [#allocation3], 1
    %s329 = scalar_lea.sflag [#allocation3], 1
    %330 = vsyncpa %s329, 1
    %331 = vsyncpa [#allocation4], 1
    %s332 = scalar_lea.sflag [#allocation4], 1
    %333 = vsyncpa %s332, 1

</llo_original>
